<compile_context>
chip_gen: v6e
topology: v6e:2x2x1
jax: 0.10.0
libtpu: 0.0.40
codegen_flags: <defaults>
</compile_context>

<pallas_src>
import math
import jax
import jax.numpy as jnp
from jax.experimental import pallas as pl
from jax.experimental.pallas import tpu as pltpu

_EPS = 1e-12  # F.normalize(p=2, dim=1) clamps the L2 norm at this eps


def _round_up(v, m):
    return ((v + m - 1) // m) * m


def _pad2d(a, rows, cols):
    r, c = a.shape
    if r == rows and c == cols:
        return a
    return jnp.pad(a, ((0, rows - r), (0, cols - c)))


def _vmem_capacity_bytes():
    """Physical VMEM capacity, with a conservative fallback (v7x per-core)."""
    cap = None
    try:
        info = pltpu.get_tpu_info()
        cap = getattr(info, "vmem_capacity_bytes", None)
    except Exception:
        cap = None
    if not cap:
        cap = 64 * 1024 * 1024
    return int(cap)


def _choose_tiles(B, N, K, itemsize, tm_max, tn_max, vmem_budget):
    """Hardware-legal (tm, tn, Kp) that fit the VMEM budget (double-buffered)."""
    sub = {1: 32, 2: 16}.get(int(itemsize), 8)      # sublane packing granule
    tm_max = max(sub, (int(tm_max) // sub) * sub)    # clamp user caps to legal
    tn_max = max(128, (int(tn_max) // 128) * 128)
    tm = min(tm_max, _round_up(B, sub))
    tn = min(tn_max, _round_up(N, 128))
    Kp = _round_up(K, 128)

    def footprint(tm_, tn_):
        # double-buffered x / W^T / out tiles + rowscale blocks + inv_w scratch
        return (itemsize * (2 * tm_ * Kp + 2 * Kp * tn_ + 2 * tm_ * tn_)
                + 4 * (2 * tm_ + 8 * tn_))

    # NOTE: for extremely large in_features a K reduction grid axis would be
    # needed; not required at CosineLinear scales, so we only shrink tiles.
    while footprint(tm, tn) > vmem_budget and tn > 128:
        tn = max(128, ((tn // 2) // 128) * 128)
    while footprint(tm, tn) > vmem_budget and tm > sub:
        tm = max(sub, ((tm // 2) // sub) * sub)
    return tm, tn, Kp


def cosine_linear_kernel(rowscale_ref, x_ref, wt_ref, o_ref, inv_w_ref):
    """One (tm, tn) tile of  sigma * normalize(x) @ normalize(W).T.

    rowscale_ref: VMEM (tm, 1)  f32   sigma / max(||x_row||, eps)  (precomputed)
    x_ref:        VMEM (tm, Kp)       raw x rows        (K resident)
    wt_ref:       VMEM (Kp, tn)       raw W^T columns   (inner-axis invariant)
    o_ref:        VMEM (tm, tn)
    inv_w_ref:    VMEM (1, tn)  f32   cached 1 / max(||w_col||, eps)
    """
    # The W^T tile only changes with the outer (N) grid index, so its inverse
    # column norms are computed once per outer tile and reused for every inner
    # batch step.
    @pl.when(pl.program_id(1) == 0)
    def _():
        wf = wt_ref[...].astype(jnp.float32)
        w_sq = jnp.sum(wf * wf, axis=0, keepdims=True)            # (1, tn)
        # 1/max(||w||, eps) == rsqrt(max(||w||^2, eps^2))  (sqrt is monotone)
        inv_w_ref[...] = jax.lax.rsqrt(jnp.maximum(w_sq, _EPS * _EPS))

    # Raw inner products on the MXU with f32 accumulation; L2 normalization is
    # applied afterwards as cheap row/column scales (sigma folded into rows).
    out = jnp.dot(x_ref[...], wt_ref[...], preferred_element_type=jnp.float32)
    o_ref[...] = (out * rowscale_ref[...] * inv_w_ref[...]).astype(o_ref.dtype)


def cosine_linear(x, weight, sigma=None, *, tm_max=256, tn_max=512,
                  vmem_limit_bytes=None, matmul_dtype=None):
    """Returns {'logits': sigma * cos_sim(x, weight)} via a tiled Pallas kernel.

    x:            (B, in_features)
    weight:       (out_features, in_features)
    sigma:        (1,) array or None (None behaves like sigma == 1)
    matmul_dtype: optional dtype (e.g. jnp.bfloat16) for the MXU operands on
                  v6e/v7x; scale math stays f32.  None = use the input dtype.
    """
    B, K = x.shape
    N, Kw = weight.shape
    assert K == Kw, "in_features mismatch between x and weight"

    out_dtype = x.dtype

    # --- wrapper precompute: per-row scale sigma / max(||x||, eps) (tiny). ---
    xf32 = x.astype(jnp.float32)
    row_norm = jnp.sqrt(jnp.sum(xf32 * xf32, axis=1, keepdims=True))    # (B, 1)
    if sigma is None:
        sigma_val = jnp.float32(1.0)
    else:
        sigma_val = jnp.asarray(sigma, jnp.float32).reshape(())
    rowscale = sigma_val / jnp.maximum(row_norm, _EPS)                  # (B, 1) f32

    # Optional operand cast for native-MXU matmuls (bf16 on v6e/v7x).
    xm = x if matmul_dtype is None else x.astype(matmul_dtype)
    wm = weight if matmul_dtype is None else weight.astype(matmul_dtype)
    itemsize = jnp.dtype(xm.dtype).itemsize

    # --- chip-aware VMEM budget and hardware-legal tiles. ---
    if vmem_limit_bytes is None:
        vmem_limit_bytes = max(32 * 1024 * 1024, (_vmem_capacity_bytes() * 7) // 8)
    vmem_limit_bytes = int(vmem_limit_bytes)
    tm, tn, Kp = _choose_tiles(B, N, K, itemsize, tm_max, tn_max,
                               int(vmem_limit_bytes * 0.9))

    Bp = _round_up(B, tm)
    Np = _round_up(N, tn)
    grid_n = Np // tn
    grid_m = Bp // tm

    x_p = _pad2d(xm, Bp, Kp)
    # One-time layout plumbing: store W as (K, N) so the kernel is a plain
    # (tm,K)@(K,tn) MXU matmul and column norms reduce to a lane vector.
    wt_p = _pad2d(wm.T, Kp, Np)
    # Zero row-scale on padded batch rows -> exactly-zero padded logits.
    rowscale_p = _pad2d(rowscale, Bp, 1)

    out_itemsize = jnp.dtype(out_dtype).itemsize
    cost = pl.CostEstimate(
        flops=2 * Bp * Np * Kp,
        transcendentals=Np,
        bytes_accessed=(grid_n * Bp * (Kp * itemsize + 4)   # x + rowscale, re-read per N tile
                        + Np * Kp * itemsize                # W once
                        + Bp * Np * out_itemsize),          # output once
    )

    # Outer axis over N tiles is independent ("parallel" -> megacore shard on
    # v7x); the inner batch axis must stay ordered when the cached inv_w path
    # is active (grid_m > 1), so mark it "arbitrary" in that case.
    dim_sem = ("parallel", "arbitrary" if grid_m > 1 else "parallel")

    logits_p = pl.pallas_call(
        cosine_linear_kernel,
        out_shape=jax.ShapeDtypeStruct((Bp, Np), out_dtype),
        grid=(grid_n, grid_m),
        in_specs=[
            pl.BlockSpec((tm, 1), lambda j, i: (i, 0)),     # precomputed row scale
            pl.BlockSpec((tm, Kp), lambda j, i: (i, 0)),    # x row tile (K resident)
            pl.BlockSpec((Kp, tn), lambda j, i: (0, j)),    # W^T col tile (inner-invariant)
        ],
        out_specs=pl.BlockSpec((tm, tn), lambda j, i: (i, j)),
        scratch_shapes=[pltpu.VMEM((1, tn), jnp.float32)],  # cached inv column norms
        compiler_params=pltpu.CompilerParams(
            dimension_semantics=dim_sem,
            vmem_limit_bytes=vmem_limit_bytes,
        ),
        cost_estimate=cost,
    )(rowscale_p, x_p, wt_p)

    return {'logits': logits_p[:B, :N]}


def init_cosine_linear_params(key, in_features, out_features, use_sigma=True):
    """Deterministic synthetic init mirroring CosineLinear.reset_parameters."""
    stdv = 1.0 / math.sqrt(in_features)
    weight = jax.random.uniform(
        key, (out_features, in_features), dtype=jnp.float32,
        minval=-stdv, maxval=stdv)
    sigma = jnp.ones((1,), dtype=jnp.float32) if use_sigma else None
    return weight, sigma


def reference_cosine_linear(x, weight, sigma=None):
    """Pure-JAX reference matching the PyTorch forward."""
    xn = x / jnp.maximum(jnp.linalg.norm(x, axis=1, keepdims=True), _EPS)
    wn = weight / jnp.maximum(jnp.linalg.norm(weight, axis=1, keepdims=True), _EPS)
    out = xn @ wn.T
    if sigma is not None:
        out = sigma[0] * out
    return out


if __name__ == "__main__":
    key = jax.random.PRNGKey(0)
    k_w, k_x, k_w2, k_x2 = jax.random.split(key, 4)

    # Test 1: small shapes consistent with the module (batch=8, in=32, out=16).
    B, IN_FEATURES, OUT_FEATURES = 8, 32, 16
    weight, sigma = init_cosine_linear_params(k_w, IN_FEATURES, OUT_FEATURES,
                                              use_sigma=True)
    x = jax.random.normal(k_x, (B, IN_FEATURES), dtype=jnp.float32)

    out = cosine_linear(x, weight, sigma)
    logits = jax.block_until_ready(out['logits'])
    ref = reference_cosine_linear(x, weight, sigma)
    assert logits.shape == (B, OUT_FEATURES)
    assert jnp.allclose(logits, ref, atol=3e-5, rtol=3e-5), "mismatch (test 1)"

    # Test 2: unaligned shapes + small tile caps -> padding/slicing and a
    # multi-tile (grid_n=3, grid_m=2) grid exercising the cached-inv_w path.
    B2, IN2, OUT2 = 10, 48, 300
    w2 = jax.random.uniform(k_w2, (OUT2, IN2), dtype=jnp.float32,
                            minval=-0.2, maxval=0.2)
    x2 = jax.random.normal(k_x2, (B2, IN2), dtype=jnp.float32)

    out2 = cosine_linear(x2, w2, sigma, tm_max=8, tn_max=128)
    logits2 = jax.block_until_ready(out2['logits'])
    ref2 = reference_cosine_linear(x2, w2, sigma)
    assert logits2.shape == (B2, OUT2)
    assert jnp.allclose(logits2, ref2, atol=3e-5, rtol=3e-5), "mismatch (test 2)"

    print("KERNEL_OK")
</pallas_src>

<mosaic_0001>
module attributes {stable_mosaic.version = 11 : i64} {
  func.func @cosine_linear_kernel(%arg0: i32, %arg1: i32, %arg2: memref<8x1xf32, #tpu.memory_space<vmem>>, %arg3: memref<8x128xf32, #tpu.memory_space<vmem>>, %arg4: memref<128x128xf32, #tpu.memory_space<vmem>>, %arg5: memref<8x128xf32, #tpu.memory_space<vmem>>, %arg6: memref<1x128xf32, #tpu.memory_space<vmem>>) attributes {dimension_semantics = [#tpu.dimension_semantics<parallel>, #tpu.dimension_semantics<parallel>], iteration_bounds = array<i64: 1, 1>, scalar_prefetch = 0 : i64, scratch_operands = 1 : i64, tpu.core_type = #tpu.core_type<tc>, window_params = [{transform_indices = @transform_0, window_bounds = array<i64: 8, 1>}, {transform_indices = @transform_1, window_bounds = array<i64: 8, 128>}, {transform_indices = @transform_2, window_bounds = array<i64: 128, 128>}, {transform_indices = @transform_3, window_bounds = array<i64: 8, 128>}]} {
    %c0_i32 = arith.constant 0 : i32
    %0 = arith.cmpi eq, %arg1, %c0_i32 : i32
    %1 = arith.extui %0 : i1 to i32
    %c0_i32_0 = arith.constant 0 : i32
    %2 = arith.cmpi ne, %1, %c0_i32_0 : i32
    scf.if %2 {
      %c0_10 = arith.constant 0 : index
      %c0_11 = arith.constant 0 : index
      %13 = vector.load %arg4[%c0_10, %c0_11] : memref<128x128xf32, #tpu.memory_space<vmem>>, vector<128x128xf32>
      %14 = arith.mulf %13, %13 : vector<128x128xf32>
      %cst_12 = arith.constant dense<0.000000e+00> : vector<128xf32>
      %15 = vector.multi_reduction <add>, %14, %cst_12 [0] : vector<128x128xf32> to vector<128xf32>
      %16 = vector.shape_cast %15 : vector<128xf32> to vector<1x128xf32>
      %cst_13 = arith.constant 1.000000e-24 : f32
      %17 = vector.broadcast %cst_13 : f32 to vector<1x128xf32>
      %18 = arith.maximumf %16, %17 : vector<1x128xf32>
      %19 = math.rsqrt %18 : vector<1x128xf32>
      %c0_14 = arith.constant 0 : index
      %c0_15 = arith.constant 0 : index
      %20 = vector.load %arg6[%c0_14, %c0_15] : memref<1x128xf32, #tpu.memory_space<vmem>>, vector<1x128xf32>
      tpu.vector_store %arg6[%c0_14, %c0_15], %19 {strides = array<i32>} : memref<1x128xf32, #tpu.memory_space<vmem>>, vector<1x128xf32>,
    } else {
    }
    %c0 = arith.constant 0 : index
    %c0_1 = arith.constant 0 : index
    %3 = vector.load %arg3[%c0, %c0_1] : memref<8x128xf32, #tpu.memory_space<vmem>>, vector<8x128xf32>
    %c0_2 = arith.constant 0 : index
    %c0_3 = arith.constant 0 : index
    %4 = vector.load %arg4[%c0_2, %c0_3] : memref<128x128xf32, #tpu.memory_space<vmem>>, vector<128x128xf32>
    %cst = arith.constant dense<0.000000e+00> : vector<8x128xf32>
    %5 = tpu.matmul %3, %4, %cst {dimension_numbers = #tpu.dot_dimension_numbers<[1], [0], [0], [1], [0, 0, 1, 1], [], []>} : vector<8x128xf32>, vector<128x128xf32>, vector<8x128xf32> -> vector<8x128xf32>
    %c0_4 = arith.constant 0 : index
    %c0_5 = arith.constant 0 : index
    %6 = vector.load %arg2[%c0_4, %c0_5] : memref<8x1xf32, #tpu.memory_space<vmem>>, vector<8x1xf32>
    %7 = vector.broadcast %6 : vector<8x1xf32> to vector<8x128xf32>
    %8 = arith.mulf %5, %7 : vector<8x128xf32>
    %c0_6 = arith.constant 0 : index
    %c0_7 = arith.constant 0 : index
    %9 = vector.load %arg6[%c0_6, %c0_7] : memref<1x128xf32, #tpu.memory_space<vmem>>, vector<1x128xf32>
    %10 = vector.broadcast %9 : vector<1x128xf32> to vector<8x128xf32>
    %11 = arith.mulf %8, %10 : vector<8x128xf32>
    %c0_8 = arith.constant 0 : index
    %c0_9 = arith.constant 0 : index
    %12 = vector.load %arg5[%c0_8, %c0_9] : memref<8x128xf32, #tpu.memory_space<vmem>>, vector<8x128xf32>
    tpu.vector_store %arg5[%c0_8, %c0_9], %11 {strides = array<i32>} : memref<8x128xf32, #tpu.memory_space<vmem>>, vector<8x128xf32>,
    return
  }
  func.func @transform_0(%arg0: i32, %arg1: i32) -> (i32, i32) {
    %c0_i32 = arith.constant 0 : i32
    %c0_i32_0 = arith.constant 0 : i32
    return %arg1, %c0_i32 : i32, i32
  }
  func.func @transform_1(%arg0: i32, %arg1: i32) -> (i32, i32) {
    %c0_i32 = arith.constant 0 : i32
    %c0_i32_0 = arith.constant 0 : i32
    return %arg1, %c0_i32 : i32, i32
  }
  func.func @transform_2(%arg0: i32, %arg1: i32) -> (i32, i32) {
    %c0_i32 = arith.constant 0 : i32
    %c0_i32_0 = arith.constant 0 : i32
    return %c0_i32, %arg0 : i32, i32
  }
  func.func @transform_3(%arg0: i32, %arg1: i32) -> (i32, i32) {
    %c0_i32 = arith.constant 0 : i32
    return %arg1, %arg0 : i32, i32
  }
}

</mosaic_0001>

<llo_original>
// kernel: tpu_custom_call.1
$region0: #{tpu_custom_call.1}
  #allocation0 [shape = 'u32[]', space=smem, size = 0x4, offset = 0x4, fixed_abs, tag = 'smem constant byte address 0x4 - core index']
  #allocation1 [shape = 'u32[144,128]{1,0:T(1,128)}', space=vmem, size = 0x12000, scoped, tag = 'internal scratch']
  #allocation2 [shape = 'f32[1,128]{1,0:T(1,128)}', space=vmem, size = 0x200, scoped, tag = 'scratch operand']
  %s0 = inlined_call_operand.vmem [shape: f32[8,1], index: 0, kind: input, shape index: {}]
  %s1 = inlined_call_operand.vmem [shape: f32[8,128], index: 1, kind: input, shape index: {}]
  %s2 = inlined_call_operand.hbm [shape: f32[128,128], index: 2, kind: input, shape index: {}]
  %s3 = inlined_call_operand.hbm [shape: f32[8,128], index: 3, kind: output, shape index: {}]
  %s4 = sld [smem:[#allocation0]]
  $region30: #{tpu_custom_call.1} parent=0
    _
  %s6 = ssub.s32 1, %s4
  %s7 = scalar_select 0, %s6, %s4
  $region1: #{tpu_custom_call.1} parent=0
    #allocation3 [shape = 'u8[65536]{0}', space=vmem, size = 0x10000, scoped, tag = 'input window, operand 2, single buffered']
    #allocation4 [shape = 's32[1]{0}', space=sflag, size = 0x4, scoped, tag = 'scoped memory for tpu_custom_call.1']
    #allocation5 [shape = 's32[1]{0}', space=sflag, size = 0x4, scoped, tag = 'scoped memory for tpu_custom_call.1']
    #allocation6 [shape = 'u8[4096]{0}', space=vmem, size = 0x1000, scoped, tag = 'output window, operand 0, single buffered']
    %8 = vsyncpa [#allocation4], 0
    %9 = vsyncpa [#allocation5], 0
    // Predicated region
    $region2: #{tpu_custom_call.1} parent=1 // pred_check
      _
    $region3: #{tpu_custom_call.1} parent=1 // pred_check_branch
      %11 = sbr.rel (0) target = $region5
    $region4: #{tpu_custom_call.1} parent=1 // pred_region
      _
    $region5: #{tpu_custom_call.1} parent=1 // pred_fallthru
      _
    // Predicated region
    $region6: #{tpu_custom_call.1} parent=1 // pred_check
      _
    $region7: #{tpu_custom_call.1} parent=1 // pred_check_branch
      %13 = sbr.rel (0) target = $region9
    $region8: #{tpu_custom_call.1} parent=1 // pred_region
      _
    $region9: #{tpu_custom_call.1} parent=1 // pred_fallthru
      _
    // Predicated region
    $region10: #{tpu_custom_call.1} parent=1 // pred_check
      _
    $region11: #{tpu_custom_call.1} parent=1 // pred_check_branch
      %15 = sbr.rel (0) target = $region13
    $region12: #{tpu_custom_call.1} parent=1 // pred_region
      %s17 = ssub.s32 2048, 2048
      %18 = vsyncadd [#allocation4], %s17
      %s19 = sshll.u32 [#allocation3], 4
      %s20 = int_to_ptr.vmem [resolvable:$true] %s19
      %25 = dma.hbm_to_vmem [thread:$0]  %s2, 2048, %s20, [#allocation4], 128, 128, 8
    $region13: #{tpu_custom_call.1} parent=1 // pred_fallthru
      _
    // Predicated region
    $region14: #{tpu_custom_call.1} parent=1 // pred_check
      _
    $region15: #{tpu_custom_call.1} parent=1 // pred_check_branch
      %27 = sbr.rel (0) target = $region17
    $region16: #{tpu_custom_call.1} parent=1 // pred_region
      %28 = dma.done [#allocation4], 2048
    $region17: #{tpu_custom_call.1} parent=1 // pred_fallthru
      _
    %p29 = scmp.eq.s32.totalorder 0, 0
    // Predicated region
    $region18: #{tpu_custom_call.1} parent=1 // pred_check
      %p30 = pneg %p29
    $region19: #{tpu_custom_call.1} parent=1 // pred_check_branch
      %32 = sbr.rel (%p30) target = $region21
    $region20: #{tpu_custom_call.1} parent=1 // pred_region
      %v33 = vld [vmem:[#allocation3] sm:$0xff]
      %v34 = vld [vmem:[#allocation3 + $0x8] sm:$0xff]
      %v35 = vld [vmem:[#allocation3 + $0x10] sm:$0xff]
      %v36 = vld [vmem:[#allocation3 + $0x18] sm:$0xff]
      %v37 = vld [vmem:[#allocation3 + $0x20] sm:$0xff]
      %v38 = vld [vmem:[#allocation3 + $0x28] sm:$0xff]
      %v39 = vld [vmem:[#allocation3 + $0x30] sm:$0xff]
      %v40 = vld [vmem:[#allocation3 + $0x38] sm:$0xff]
      %v41 = vld [vmem:[#allocation3 + $0x40] sm:$0xff]
      %v42 = vld [vmem:[#allocation3 + $0x48] sm:$0xff]
      %v43 = vld [vmem:[#allocation3 + $0x50] sm:$0xff]
      %v44 = vld [vmem:[#allocation3 + $0x58] sm:$0xff]
      %v45 = vld [vmem:[#allocation3 + $0x60] sm:$0xff]
      %v46 = vld [vmem:[#allocation3 + $0x68] sm:$0xff]
      %v47 = vld [vmem:[#allocation3 + $0x70] sm:$0xff]
      %v48 = vld [vmem:[#allocation3 + $0x78] sm:$0xff]
      %v49 = vmul.f32 %v33, %v33
      %v50 = vmul.f32 %v34, %v34
      %v51 = vmul.f32 %v35, %v35
      %v52 = vmul.f32 %v36, %v36
      %v53 = vmul.f32 %v37, %v37
      %v54 = vmul.f32 %v38, %v38
      %v55 = vmul.f32 %v39, %v39
      %v56 = vmul.f32 %v40, %v40
      %v57 = vmul.f32 %v41, %v41
      %v58 = vmul.f32 %v42, %v42
      %v59 = vmul.f32 %v43, %v43
      %v60 = vmul.f32 %v44, %v44
      %v61 = vmul.f32 %v45, %v45
      %v62 = vmul.f32 %v46, %v46
      %v63 = vmul.f32 %v47, %v47
      %v64 = vmul.f32 %v48, %v48
      %v65 = vadd.f32 %v49, %v50
      %v66 = vadd.f32 %v65, %v51
      %v67 = vadd.f32 %v66, %v52
      %v68 = vadd.f32 %v67, %v53
      %v69 = vadd.f32 %v68, %v54
      %v70 = vadd.f32 %v69, %v55
      %v71 = vadd.f32 %v70, %v56
      %v72 = vadd.f32 %v71, %v57
      %v73 = vadd.f32 %v72, %v58
      %v74 = vadd.f32 %v73, %v59
      %v75 = vadd.f32 %v74, %v60
      %v76 = vadd.f32 %v75, %v61
      %v77 = vadd.f32 %v76, %v62
      %v78 = vadd.f32 %v77, %v63
      %v79 = vadd.f32 %v78, %v64
      %v80 = vrot.slane %v79, 4
      %v81 = vadd.f32 %v79, %v80
      %v82 = vrot.slane %v81, 2
      %v83 = vadd.f32 %v81, %v82
      %v84 = vrot.slane %v83, 1
      %v85 = vadd.f32 %v83, %v84
      %v86 = vmax.f32 %v85, 1e-24
      %v87 = vrsqrt.pop %v86
      %88 = vst [vmem:[#allocation2] sm:$0x1] %v87
    $region21: #{tpu_custom_call.1} parent=1 // pred_fallthru
      _
    %v89 = vld [vmem:[%s1] sm:$0xff]
    %v90 = vld [vmem:[#allocation3] sm:$0xff]
    %v91 = vld [vmem:[#allocation3 + $0x8] sm:$0xff]
    %v92 = vld [vmem:[#allocation3 + $0x10] sm:$0xff]
    %v93 = vld [vmem:[#allocation3 + $0x18] sm:$0xff]
    %v94 = vld [vmem:[#allocation3 + $0x20] sm:$0xff]
    %v95 = vld [vmem:[#allocation3 + $0x28] sm:$0xff]
    %v96 = vld [vmem:[#allocation3 + $0x30] sm:$0xff]
    %v97 = vld [vmem:[#allocation3 + $0x38] sm:$0xff]
    %v98 = vld [vmem:[#allocation3 + $0x40] sm:$0xff]
    %v99 = vld [vmem:[#allocation3 + $0x48] sm:$0xff]
    %v100 = vld [vmem:[#allocation3 + $0x50] sm:$0xff]
    %v101 = vld [vmem:[#allocation3 + $0x58] sm:$0xff]
    %v102 = vld [vmem:[#allocation3 + $0x60] sm:$0xff]
    %v103 = vld [vmem:[#allocation3 + $0x68] sm:$0xff]
    %v104 = vld [vmem:[#allocation3 + $0x70] sm:$0xff]
    %v105 = vld [vmem:[#allocation3 + $0x78] sm:$0xff]
    %106 = vmatprep.subr.mxu0 0.0
    %107 = vmatpush1.msra.mxu0 %v105
    %108 = vmatprep.subr.mxu0 0.0
    %109 = vmatpush1.msra.mxu0 %v104
    %110 = vmatprep.subr.mxu0 0.0
    %111 = vmatpush1.msra.mxu0 %v103
    %112 = vmatprep.subr.mxu0 0.0
    %113 = vmatpush1.msra.mxu0 %v102
    %114 = vmatprep.subr.mxu0 0.0
    %115 = vmatpush1.msra.mxu0 %v101
    %116 = vmatprep.subr.mxu0 0.0
    %117 = vmatpush1.msra.mxu0 %v100
    %118 = vmatprep.subr.mxu0 0.0
    %119 = vmatpush1.msra.mxu0 %v99
    %120 = vmatprep.subr.mxu0 0.0
    %121 = vmatpush1.msra.mxu0 %v98
    %122 = vmatprep.subr.mxu0 0.0
    %123 = vmatpush1.msra.mxu0 %v97
    %124 = vmatprep.subr.mxu0 0.0
    %125 = vmatpush1.msra.mxu0 %v96
    %126 = vmatprep.subr.mxu0 0.0
    %127 = vmatpush1.msra.mxu0 %v95
    %128 = vmatprep.subr.mxu0 0.0
    %129 = vmatpush1.msra.mxu0 %v94
    %130 = vmatprep.subr.mxu0 0.0
    %131 = vmatpush1.msra.mxu0 %v93
    %132 = vmatprep.subr.mxu0 0.0
    %133 = vmatpush1.msra.mxu0 %v92
    %134 = vmatprep.subr.mxu0 0.0
    %135 = vmatpush1.msra.mxu0 %v91
    %136 = vmatprep.subr.mxu0 0.0
    %137 = vmatpush1.msra.mxu0 %v90
    %138 = vmatprep.subr.mxu0 0.0
    %139 = vmatpush2.msra.mxu0 0.0
    %140 = vmatprep.subr.mxu0 0.0
    %141 = vmatpush2.msra.mxu0 0.0
    %142 = vmatprep.subr.mxu0 0.0
    %143 = vmatpush2.msra.mxu0 0.0
    %144 = vmatprep.subr.mxu0 0.0
    %145 = vmatpush2.msra.mxu0 0.0
    %146 = vmatprep.subr.mxu0 0.0
    %147 = vmatpush2.msra.mxu0 0.0
    %148 = vmatprep.subr.mxu0 0.0
    %149 = vmatpush2.msra.mxu0 0.0
    %150 = vmatprep.subr.mxu0 0.0
    %151 = vmatpush2.msra.mxu0 0.0
    %152 = vmatprep.subr.mxu0 0.0
    %153 = vmatpush2.msra.mxu0 0.0
    %154 = vmatprep.subr.mxu0 0.0
    %155 = vmatpush2.msra.mxu0 0.0
    %156 = vmatprep.subr.mxu0 0.0
    %157 = vmatpush2.msra.mxu0 0.0
    %158 = vmatprep.subr.mxu0 0.0
    %159 = vmatpush2.msra.mxu0 0.0
    %160 = vmatprep.subr.mxu0 0.0
    %161 = vmatpush2.msra.mxu0 0.0
    %162 = vmatprep.subr.mxu0 0.0
    %163 = vmatpush2.msra.mxu0 0.0
    %164 = vmatprep.subr.mxu0 0.0
    %165 = vmatpush2.msra.mxu0 0.0
    %166 = vmatprep.subr.mxu0 0.0
    %167 = vmatpush2.msra.mxu0 0.0
    %168 = vmatprep.subr.mxu0 0.0
    %169 = vmatpush2.msra.mxu0 0.0
    %170 = vmatprep.mubr.f32.mxu0 0.0
    %171 = vmatmul.mubr.f32.gmra.mxu0 %v89
    %v172 = vpop.f32.mrf.mxu0
    %v173 = vadd.f32 0.0, %v172
    %v174 = vpop.f32.mrf.mxu0
    %175 = vdwg.mxu0
    %v176 = vld [vmem:[%s0] sm:$0xff]
    %178 = vset.pattern.permute.xlu0 0
    %179 = vperm.xlu0 %178, %v176
    %v180 = vpop.permute.xlu0 %179
    %v182 = vmul.f32 %v173, %v180
    %v183 = vld [vmem:[#allocation2] sm:$0x1]
    %v185 = vlaneseq
    %v186 = vshrl.u32 %v185, 7
    %v187 = vsub.s32 0, %v186
    %v188 = vrot.slane %v183, %v187
    %v190 = vmul.f32 %v182, %v188
    %191 = vst [vmem:[#allocation6] sm:$0xff] %v190
    // Predicated region
    $region22: #{tpu_custom_call.1} parent=1 // pred_check
      _
    $region23: #{tpu_custom_call.1} parent=1 // pred_check_branch
      %193 = sbr.rel (0) target = $region25
    $region24: #{tpu_custom_call.1} parent=1 // pred_region
      %s195 = ssub.s32 128, 128
      %196 = vsyncadd [#allocation5], %s195
      %s198 = sshll.u32 [#allocation6], 4
      %s199 = int_to_ptr.vmem [resolvable:$true] %s198
      %201 = dma.vmem_to_hbm [thread:$0]  %s199, 128, %s3, [#allocation5]
    $region25: #{tpu_custom_call.1} parent=1 // pred_fallthru
      _
    // Predicated region
    $region26: #{tpu_custom_call.1} parent=1 // pred_check
      _
    $region27: #{tpu_custom_call.1} parent=1 // pred_check_branch
      %203 = sbr.rel (0) target = $region29
    $region28: #{tpu_custom_call.1} parent=1 // pred_region
      %204 = dma.done [#allocation5], 128
    $region29: #{tpu_custom_call.1} parent=1 // pred_fallthru
      _
    %205 = vsyncpa [#allocation4], 1
    %206 = vsyncpa [#allocation5], 1

</llo_original>
